<compile_context>
chip_gen: v7x
topology: tpu7x:2x2x1
jax: 0.10.0
libtpu: 0.0.40
codegen_flags: <defaults>
</compile_context>

<pallas_src>
import math

import jax
import jax.numpy as jnp
import numpy as np
from jax.experimental import pallas as pl
from jax.experimental.pallas import tpu as pltpu


# ----------------------------------------------------------------------------
# Path 1 (default): zero-copy identity.
# Output aliases the input HBM buffer (input_output_aliases={0: 0}); the kernel
# body performs no data movement, so essentially no HBM bandwidth is spent
# (inside a larger jit the aliasing is free; at the eager top level XLA at most
# inserts one protective copy for the non-donated parameter).
# ----------------------------------------------------------------------------
def _alias_noop_kernel(x_hbm_ref, o_hbm_ref):
    # Output buffer *is* the input buffer; nothing to compute or move.
    del x_hbm_ref, o_hbm_ref


def _features_forward_aliased(x: jax.Array) -> jax.Array:
    return pl.pallas_call(
        _alias_noop_kernel,
        out_shape=jax.ShapeDtypeStruct(x.shape, x.dtype),
        in_specs=[pl.BlockSpec(memory_space=pl.ANY)],
        out_specs=pl.BlockSpec(memory_space=pl.ANY),
        input_output_aliases={0: 0},
    )(x)


# ----------------------------------------------------------------------------
# Path 2: materializing copy (for callers that need a fresh buffer).
# Lane-dense tiled copy: last dim a multiple of 128 (no masked vst), ~2 MiB
# blocks (double-buffered in+out stays well under the 32 MiB scoped-VMEM
# default, including v7x's 64 MiB parts), grid axis marked "parallel" so v7x
# can shard steps across its 2 TensorCores (neutral on v5e/v6e).
# ----------------------------------------------------------------------------
def _copy_kernel(x_ref, o_ref):
    # Full-tile VMEM pass-through; the kernel is purely HBM-bandwidth bound.
    o_ref[...] = x_ref[...]


def _lane_dense_2d(shape):
    """Factor `shape` into (rows, lanes) with lanes a multiple of 128 when possible."""
    total = math.prod(shape)
    if len(shape) >= 2:
        hw = shape[-2] * shape[-1]
        if hw % 128 == 0 and hw <= 4096:
            return total // hw, hw
    for lanes in (4096, 2048, 1024, 512, 256, 128):
        if total % lanes == 0:
            return total // lanes, lanes
    # Lane-sparse fallback for odd sizes: keep the original last dim (full extent).
    return total // shape[-1], shape[-1]


def features_forward_copy(x: jax.Array) -> jax.Array:
    """Identity feature map that materializes a fresh output buffer."""
    shape, dtype = x.shape, x.dtype
    rows, lanes = _lane_dense_2d(shape)
    x2d = x.reshape(rows, lanes)

    itemsize = jnp.dtype(dtype).itemsize
    # Packed-sublane alignment: 8 rows for 32-bit, 16 for bf16, 32 for int8.
    sublane = max(1, 32 // itemsize)
    target_block_bytes = 2 * 1024 * 1024
    block_rows = max(1, target_block_bytes // (lanes * itemsize))
    block_rows = max(sublane, (block_rows // sublane) * sublane)
    block_rows = min(block_rows, rows)

    grid = (pl.cdiv(rows, block_rows),)
    out2d = pl.pallas_call(
        _copy_kernel,
        out_shape=jax.ShapeDtypeStruct((rows, lanes), dtype),
        grid=grid,
        in_specs=[pl.BlockSpec((block_rows, lanes), lambda i: (i, 0))],
        out_specs=pl.BlockSpec((block_rows, lanes), lambda i: (i, 0)),
        compiler_params=pltpu.CompilerParams(
            dimension_semantics=("parallel",),
        ),
    )(x2d)
    return out2d.reshape(shape)


def features_forward(x: jax.Array) -> jax.Array:
    """Forward pass of the (abstract) Features module: identity feature map."""
    try:
        return _features_forward_aliased(x)
    except Exception:
        # TODO(synk): if zero-copy output aliasing is unavailable in this
        # JAX/Mosaic version, fall back to the tiled lane-dense copy kernel.
        return features_forward_copy(x)


class Features:
    """JAX/Pallas mirror of the PyTorch Features base class."""

    def __init__(self):
        self.feature_size = -1
        self.params = {}  # the base class owns no parameters

    def __call__(self, x):
        return features_forward(x)

    def param_groups(self, start_lr, feature_mult=1):
        # Mirror of the PyTorch API (no trainable params in the base class).
        return [{"params": list(self.params.values()), "lr": start_lr * feature_mult}]

    # TODO(synk): load_model() does torch.load file I/O — no Pallas equivalent.


if __name__ == "__main__":
    key = jax.random.PRNGKey(0)
    # Small NCHW input consistent with a conv-style feature extractor.
    x = jax.random.normal(key, (2, 4, 16, 16), dtype=jnp.float32)
    x_host = np.asarray(jax.device_get(x))  # reference copy, robust to aliasing

    model = Features()

    # Materializing tiled lane-dense copy path.
    y_copy = jax.block_until_ready(features_forward_copy(x))
    # Default zero-copy (aliased output) path.
    y = jax.block_until_ready(model(x))

    assert y.shape == x_host.shape and y.dtype == x_host.dtype
    assert y_copy.shape == x_host.shape and y_copy.dtype == x_host.dtype
    np.testing.assert_allclose(np.asarray(jax.device_get(y)), x_host)
    np.testing.assert_allclose(np.asarray(jax.device_get(y_copy)), x_host)
    print("KERNEL_OK")
</pallas_src>

<mosaic_0001>
module attributes {stable_mosaic.version = 11 : i64} {
  func.func @_copy_kernel(%arg0: i32, %arg1: memref<8x256xf32, #tpu.memory_space<vmem>>, %arg2: memref<8x256xf32, #tpu.memory_space<vmem>>) attributes {dimension_semantics = [#tpu.dimension_semantics<parallel>], iteration_bounds = array<i64: 1>, scalar_prefetch = 0 : i64, scratch_operands = 0 : i64, tpu.core_type = #tpu.core_type<tc>, window_params = [{transform_indices = @transform_0, window_bounds = array<i64: 8, 256>}, {transform_indices = @transform_1, window_bounds = array<i64: 8, 256>}]} {
    %c0 = arith.constant 0 : index
    %c0_0 = arith.constant 0 : index
    %0 = vector.load %arg1[%c0, %c0_0] : memref<8x256xf32, #tpu.memory_space<vmem>>, vector<8x256xf32>
    %c0_1 = arith.constant 0 : index
    %c0_2 = arith.constant 0 : index
    %1 = vector.load %arg2[%c0_1, %c0_2] : memref<8x256xf32, #tpu.memory_space<vmem>>, vector<8x256xf32>
    tpu.vector_store %arg2[%c0_1, %c0_2], %0 {strides = array<i32>} : memref<8x256xf32, #tpu.memory_space<vmem>>, vector<8x256xf32>,
    return
  }
  func.func @transform_0(%arg0: i32) -> (i32, i32) {
    %c0_i32 = arith.constant 0 : i32
    %c0_i32_0 = arith.constant 0 : i32
    return %arg0, %c0_i32 : i32, i32
  }
  func.func @transform_1(%arg0: i32) -> (i32, i32) {
    %c0_i32 = arith.constant 0 : i32
    %c0_i32_0 = arith.constant 0 : i32
    return %arg0, %c0_i32 : i32, i32
  }
}

</mosaic_0001>

<llo_original>
// kernel: tpu_custom_call.1
$region0: #{tpu_custom_call.1}
  #allocation0 [shape = 'u32[]', space=smem, size = 0x4, offset = 0x4, fixed_abs, tag = 'smem constant byte address 0x4 - core index']
  #allocation1 [shape = 'u32[144,128]{1,0:T(1,128)}', space=vmem, size = 0x12000, scoped, tag = 'internal scratch']
  %s0 = inlined_call_operand.hbm [shape: f32[8,256], index: 0, kind: input, shape index: {}]
  %s1 = inlined_call_operand.hbm [shape: f32[8,256], index: 1, kind: output, shape index: {}]
  %s2 = sld [smem:[#allocation0]]
  $region18: #{tpu_custom_call.1} parent=0
    _
  %s4 = ssub.s32 1, %s2
  %s5 = scalar_select 0, %s4, %s2
  $region1: #{tpu_custom_call.1} parent=0
    #allocation2 [shape = 'u8[8192]{0}', space=vmem, size = 0x2000, scoped, tag = 'input window, operand 0, single buffered']
    #allocation3 [shape = 's32[1]{0}', space=sflag, size = 0x4, scoped, tag = 'scoped memory for tpu_custom_call.1']
    #allocation4 [shape = 's32[1]{0}', space=sflag, size = 0x4, scoped, tag = 'scoped memory for tpu_custom_call.1']
    #allocation5 [shape = 'u8[8192]{0}', space=vmem, size = 0x2000, scoped, tag = 'output window, operand 0, single buffered']
    %6 = vsyncpa [#allocation3], 0
    %7 = vsyncpa [#allocation4], 0
    // Predicated region
    $region2: #{tpu_custom_call.1} parent=1 // pred_check
      _
    $region3: #{tpu_custom_call.1} parent=1 // pred_check_branch
      %9 = sbr.rel (0) target = $region5
    $region4: #{tpu_custom_call.1} parent=1 // pred_region
      %s11 = ssub.s32 256, 256
      %12 = vsyncadd [#allocation3], %s11
      %s14 = sshll.u32 [#allocation2], 4
      %s15 = int_to_ptr.vmem [resolvable:$true] %s14
      %17 = dma.hbm_to_vmem [thread:$0]  %s0, 256, %s15, [#allocation3]
    $region5: #{tpu_custom_call.1} parent=1 // pred_fallthru
      _
    // Predicated region
    $region6: #{tpu_custom_call.1} parent=1 // pred_check
      _
    $region7: #{tpu_custom_call.1} parent=1 // pred_check_branch
      %19 = sbr.rel (0) target = $region9
    $region8: #{tpu_custom_call.1} parent=1 // pred_region
      %20 = dma.done [#allocation3], 256
    $region9: #{tpu_custom_call.1} parent=1 // pred_fallthru
      _
    %v21 = vld [vmem:[#allocation2] sm:$0xff]
    %v22 = vld [vmem:[#allocation2 + $0x8] sm:$0xff]
    %23 = vst [vmem:[#allocation5] sm:$0xff] %v21
    %24 = vst [vmem:[#allocation5 + $0x8] sm:$0xff] %v22
    // Predicated region
    $region10: #{tpu_custom_call.1} parent=1 // pred_check
      _
    $region11: #{tpu_custom_call.1} parent=1 // pred_check_branch
      %26 = sbr.rel (0) target = $region13
    $region12: #{tpu_custom_call.1} parent=1 // pred_region
      %s28 = ssub.s32 256, 256
      %29 = vsyncadd [#allocation4], %s28
      %s31 = sshll.u32 [#allocation5], 4
      %s32 = int_to_ptr.vmem [resolvable:$true] %s31
      %34 = dma.vmem_to_hbm [thread:$0]  %s32, 256, %s1, [#allocation4]
    $region13: #{tpu_custom_call.1} parent=1 // pred_fallthru
      _
    // Predicated region
    $region14: #{tpu_custom_call.1} parent=1 // pred_check
      _
    $region15: #{tpu_custom_call.1} parent=1 // pred_check_branch
      %36 = sbr.rel (0) target = $region17
    $region16: #{tpu_custom_call.1} parent=1 // pred_region
      %37 = dma.done [#allocation4], 256
    $region17: #{tpu_custom_call.1} parent=1 // pred_fallthru
      _
    %38 = vsyncpa [#allocation3], 1
    %39 = vsyncpa [#allocation4], 1

</llo_original>
